<compile_context>
chip_gen: v6e
topology: v6e:2x2x1
jax: 0.10.0
libtpu: 0.0.40
codegen_flags: <defaults>
</compile_context>

<pallas_src>
import functools
import math

import jax
import jax.numpy as jnp
import numpy as np
from jax import lax
from jax.experimental import pallas as pl
from jax.experimental.pallas import tpu as pltpu


def _learnability_kernel(a_ref, sy_ref, x_ref, out_ref, *, order, binary, n, d):
    X = x_ref[...].astype(jnp.float32)            # [N, D]
    sy = sy_ref[...].astype(jnp.float32)          # [2, max(D, N)]  packed (s ; y)
    s_row = sy[0:1, :d]                           # [1, D]
    y_row = sy[1:2, :n]                           # [1, N]

    # One-time Gram matrix over the feature dimension (the only D-dependent op):
    #   G[i, m] = sum_j X[i, j] * s[j] * X[m, j]          (symmetric)
    # dot_general contracts dim 1 of both operands -> no transposed copy of X.
    G = lax.dot_general(
        X * s_row, X,
        dimension_numbers=(((1,), (1,)), ((), ())),
        preferred_element_type=jnp.float32,
    )                                             # [N, N]

    row = lax.broadcasted_iota(jnp.int32, (n, n), 0)
    col = lax.broadcasted_iota(jnp.int32, (n, n), 1)
    A_L = jnp.where(col < row, G, 0.0)            # strict lower of G  (SL * G)
    A_U = jnp.where(col > row, G, 0.0)            # strict upper of G  (SU * G)

    # Original (column-vector) recurrences:
    #   triudr step: r <- A_U @ r        triudl step: l <- A_L @ l
    # G symmetric => A_U.T == A_L, so with lane-dense row vectors:
    #   r_row <- r_row @ A_L             l_row <- l_row @ A_U
    # The two chains do not depend on each other, so each "round" issues two
    # independent matvecs that overlap in the MXU pipeline: serial depth is
    # ceil(order/2) MXU round-trips instead of order.
    n_r = (order + 1) // 2                        # number of r updates
    n_l = order // 2                              # number of l updates
    rs = [y_row]
    ls = [y_row]
    for m in range(max(n_r, n_l)):
        if m < n_r:
            rs.append(jnp.dot(rs[m], A_L, preferred_element_type=jnp.float32))
        if m < n_l:
            ls.append(jnp.dot(ls[m], A_U, preferred_element_type=jnp.float32))

    # Deferred, a[k]-weighted reduction (entirely off the MXU critical chain):
    #   k = 2m   : a[k] * <l_m,     r_{m+1}>     (l_0 = y)
    #   k = 2m+1 : a[k] * <l_{m+1}, r_{m+1}>
    acc = jnp.zeros((1, n), jnp.float32)
    for k in range(order):
        m = k // 2
        l_vec = ls[m] if k % 2 == 0 else ls[m + 1]
        acc = acc + a_ref[k] * (l_vec * rs[m + 1])

    z = jnp.sum(acc, axis=1, keepdims=True)       # single cross-lane reduce [1, 1]
    if binary:
        # ret_val: 0.5 * (1 - safesqrt(ramp(z))) -- forward semantics only.
        # TODO(synk): ramp/safesqrt custom backward rules are not represented here.
        out_ref[...] = 0.5 * (1.0 - jnp.sqrt(jnp.clip(z, 0.0, 1.0)))
    else:
        out_ref[...] = 1.0 - z


def learnability_mb_batched(a, s, X, y, *, binary=False):
    """Batched forward: B problems in one gridded pallas_call.

    a: [order] f32 (coeff / binom(Nminibatch, k+2)).
    s: [B, D] or [B, D, 1];  X: [B, N, D];  y: [B, N] or [B, N, 1].
    Returns [B, 1, 1] float32.
    """
    order = int(a.shape[0])
    B, N, D = X.shape
    max_dn = max(D, N)

    a_f = jnp.asarray(a, jnp.float32)
    s2 = jnp.reshape(s, (B, D)).astype(jnp.float32)
    y2 = jnp.reshape(y, (B, N)).astype(jnp.float32)
    # Pack s and y into one padded operand -> one input DMA instead of two.
    s_p = jnp.pad(s2, ((0, 0), (0, max_dn - D)))
    y_p = jnp.pad(y2, ((0, 0), (0, max_dn - N)))
    sy = jnp.stack([s_p, y_p], axis=1)            # [B, 2, max_dn]

    kernel = functools.partial(
        _learnability_kernel, order=order, binary=binary, n=N, d=D)
    return pl.pallas_call(
        kernel,
        out_shape=jax.ShapeDtypeStruct((B, 1, 1), jnp.float32),
        grid=(B,),
        in_specs=[
            pl.BlockSpec(memory_space=pltpu.MemorySpace.SMEM),     # a (coefficients)
            pl.BlockSpec((None, 2, max_dn), lambda b: (b, 0, 0)),  # packed (s ; y)
            pl.BlockSpec((None, N, D), lambda b: (b, 0, 0)),       # X
        ],
        out_specs=pl.BlockSpec((None, 1, 1), lambda b: (b, 0, 0)),
        compiler_params=pltpu.CompilerParams(
            dimension_semantics=("parallel",)),
    )(a_f, sy, X.astype(jnp.float32))


def learnability_mb(a, s, X, y, *, binary=False):
    """Single-instance forward matching the PyTorch module:
    s: [D, 1], X: [N, D], y: [N, 1] -> [1, 1]."""
    out = learnability_mb_batched(a, s[None], X[None], y[None], binary=binary)
    return out[0]


def _reference(a, s, X, y, binary=False):
    """Pure-numpy transcription of the PyTorch forward."""
    a = np.asarray(a, np.float64)
    X = np.asarray(X, np.float64)
    s = np.asarray(s, np.float64)
    y = np.asarray(y, np.float64)
    l = y.copy()
    r = y.copy()
    z = np.zeros((1, 1))
    for k in range(a.shape[0]):
        if k % 2 == 0:
            U = X * r
            Z = np.zeros_like(X)
            Z[:-1] = X[:-1] * np.flip(np.cumsum(np.flip(U, 0), 0), 0)[1:]
            r = Z @ s
        else:
            U = X * l
            Z = np.zeros_like(X)
            Z[1:] = X[1:] * np.cumsum(U, 0)[:-1]
            l = Z @ s
        z = z + a[k] * (l.T @ r)
    if binary:
        return 0.5 * (1.0 - np.sqrt(np.clip(z, 0.0, 1.0)))
    return 1.0 - z


if __name__ == "__main__":
    # Module __init__: a = coeff / binom(Nminibatch, arange(coeff.size) + 2)
    N = 8          # Nminibatch
    D = 32         # feature dimension
    B = 4          # batched problem instances (one pallas_call, grid=(B,))
    coeff = np.array([1.0, 0.5, 0.25, 0.125], dtype=np.float64)   # order = 4
    a_np = np.array(
        [c / math.comb(N, k + 2) for k, c in enumerate(coeff)], dtype=np.float32)
    a = jnp.asarray(a_np)

    key = jax.random.PRNGKey(0)
    k1, k2, k3 = jax.random.split(key, 3)
    Xb = jax.random.normal(k1, (B, N, D), dtype=jnp.float32) * 0.1
    sb = jax.random.uniform(k2, (B, D, 1), dtype=jnp.float32)
    yb = (jax.random.uniform(k3, (B, N, 1), dtype=jnp.float32) > 0.5
          ).astype(jnp.float32) * 2.0 - 1.0

    # Batched call (the realistic usage): all B problems in one gridded launch.
    out_b = jax.block_until_ready(learnability_mb_batched(a, sb, Xb, yb, binary=False))
    out_bin = jax.block_until_ready(learnability_mb_batched(a, sb, Xb, yb, binary=True))
    for b in range(B):
        ref = _reference(a_np, np.asarray(sb[b]), np.asarray(Xb[b]),
                         np.asarray(yb[b]), binary=False)
        np.testing.assert_allclose(np.asarray(out_b[b]), ref, rtol=1e-4, atol=1e-5)
        ref_bin = _reference(a_np, np.asarray(sb[b]), np.asarray(Xb[b]),
                             np.asarray(yb[b]), binary=True)
        np.testing.assert_allclose(np.asarray(out_bin[b]), ref_bin, rtol=1e-4, atol=1e-5)

    # Single-instance call matching the original module's forward signature.
    out_1 = jax.block_until_ready(learnability_mb(a, sb[0], Xb[0], yb[0], binary=False))
    ref_1 = _reference(a_np, np.asarray(sb[0]), np.asarray(Xb[0]),
                       np.asarray(yb[0]), binary=False)
    np.testing.assert_allclose(np.asarray(out_1), ref_1, rtol=1e-4, atol=1e-5)

    print("KERNEL_OK")
</pallas_src>

<mosaic_0001>
module attributes {stable_mosaic.version = 11 : i64} {
  func.func @_learnability_kernel(%arg0: i32, %arg1: memref<4xf32, #tpu.memory_space<smem>>, %arg2: memref<1x2x32xf32, #tpu.memory_space<vmem>>, %arg3: memref<1x8x32xf32, #tpu.memory_space<vmem>>, %arg4: memref<1x1x1xf32, #tpu.memory_space<vmem>>) attributes {dimension_semantics = [#tpu.dimension_semantics<parallel>], iteration_bounds = array<i64: 4>, scalar_prefetch = 0 : i64, scratch_operands = 0 : i64, tpu.core_type = #tpu.core_type<tc>, window_params = [{transform_indices = @transform_0, window_bounds = array<i64: 4>}, {transform_indices = @transform_1, window_bounds = array<i64: 1, 2, 32>}, {transform_indices = @transform_2, window_bounds = array<i64: 1, 8, 32>}, {transform_indices = @transform_3, window_bounds = array<i64: 1, 1, 1>}]} {
    %c0 = arith.constant 0 : index
    %c0_0 = arith.constant 0 : index
    %c0_1 = arith.constant 0 : index
    %0 = vector.load %arg3[%c0, %c0_0, %c0_1] : memref<1x8x32xf32, #tpu.memory_space<vmem>>, vector<1x8x32xf32>
    %1 = vector.shape_cast %0 : vector<1x8x32xf32> to vector<8x32xf32>
    %c0_2 = arith.constant 0 : index
    %c0_3 = arith.constant 0 : index
    %c0_4 = arith.constant 0 : index
    %2 = vector.load %arg2[%c0_2, %c0_3, %c0_4] : memref<1x2x32xf32, #tpu.memory_space<vmem>>, vector<1x2x32xf32>
    %3 = vector.shape_cast %2 : vector<1x2x32xf32> to vector<2x32xf32>
    %4 = vector.extract_strided_slice %3 {offsets = [0, 0], sizes = [1, 32], strides = [1, 1]} : vector<2x32xf32> to vector<1x32xf32>
    %5 = vector.extract_strided_slice %3 {offsets = [1, 0], sizes = [1, 8], strides = [1, 1]} : vector<2x32xf32> to vector<1x8xf32>
    %6 = vector.broadcast %4 : vector<1x32xf32> to vector<8x32xf32>
    %7 = arith.mulf %1, %6 : vector<8x32xf32>
    %cst = arith.constant dense<0.000000e+00> : vector<8x8xf32>
    %8 = tpu.matmul %7, %1, %cst {dimension_numbers = #tpu.dot_dimension_numbers<[1], [1], [0], [0], [0, 0, 1, 0], [], []>} : vector<8x32xf32>, vector<8x32xf32>, vector<8x8xf32> -> vector<8x8xf32>
    %9 = tpu.iota {dimensions = array<i32: 0>} : vector<8x8xi32>
    %10 = tpu.iota {dimensions = array<i32: 1>} : vector<8x8xi32>
    %11 = arith.cmpi slt, %10, %9 : vector<8x8xi32>
    %cst_5 = arith.constant 0.000000e+00 : f32
    %12 = vector.broadcast %cst_5 : f32 to vector<8x8xf32>
    %13 = arith.select %11, %8, %12 : vector<8x8xi1>, vector<8x8xf32>
    %14 = arith.cmpi sgt, %10, %9 : vector<8x8xi32>
    %cst_6 = arith.constant 0.000000e+00 : f32
    %15 = vector.broadcast %cst_6 : f32 to vector<8x8xf32>
    %16 = arith.select %14, %8, %15 : vector<8x8xi1>, vector<8x8xf32>
    %cst_7 = arith.constant dense<0.000000e+00> : vector<1x8xf32>
    %17 = tpu.matmul %5, %13, %cst_7 {dimension_numbers = #tpu.dot_dimension_numbers<[1], [0], [0], [1], [0, 0, 1, 1], [], []>} : vector<1x8xf32>, vector<8x8xf32>, vector<1x8xf32> -> vector<1x8xf32>
    %cst_8 = arith.constant dense<0.000000e+00> : vector<1x8xf32>
    %18 = tpu.matmul %5, %16, %cst_8 {dimension_numbers = #tpu.dot_dimension_numbers<[1], [0], [0], [1], [0, 0, 1, 1], [], []>} : vector<1x8xf32>, vector<8x8xf32>, vector<1x8xf32> -> vector<1x8xf32>
    %cst_9 = arith.constant dense<0.000000e+00> : vector<1x8xf32>
    %19 = tpu.matmul %17, %13, %cst_9 {dimension_numbers = #tpu.dot_dimension_numbers<[1], [0], [0], [1], [0, 0, 1, 1], [], []>} : vector<1x8xf32>, vector<8x8xf32>, vector<1x8xf32> -> vector<1x8xf32>
    %cst_10 = arith.constant dense<0.000000e+00> : vector<1x8xf32>
    %20 = tpu.matmul %18, %16, %cst_10 {dimension_numbers = #tpu.dot_dimension_numbers<[1], [0], [0], [1], [0, 0, 1, 1], [], []>} : vector<1x8xf32>, vector<8x8xf32>, vector<1x8xf32> -> vector<1x8xf32>
    %cst_11 = arith.constant 0.000000e+00 : f32
    %21 = vector.broadcast %cst_11 : f32 to vector<1x8xf32>
    %c0_12 = arith.constant 0 : index
    %22 = memref.load %arg1[%c0_12] : memref<4xf32, #tpu.memory_space<smem>>
    %23 = arith.mulf %5, %17 : vector<1x8xf32>
    %24 = vector.broadcast %22 : f32 to vector<1x8xf32>
    %25 = arith.mulf %24, %23 : vector<1x8xf32>
    %26 = arith.addf %21, %25 : vector<1x8xf32>
    %c1 = arith.constant 1 : index
    %27 = memref.load %arg1[%c1] : memref<4xf32, #tpu.memory_space<smem>>
    %28 = arith.mulf %18, %17 : vector<1x8xf32>
    %29 = vector.broadcast %27 : f32 to vector<1x8xf32>
    %30 = arith.mulf %29, %28 : vector<1x8xf32>
    %31 = arith.addf %26, %30 : vector<1x8xf32>
    %c2 = arith.constant 2 : index
    %32 = memref.load %arg1[%c2] : memref<4xf32, #tpu.memory_space<smem>>
    %33 = arith.mulf %18, %19 : vector<1x8xf32>
    %34 = vector.broadcast %32 : f32 to vector<1x8xf32>
    %35 = arith.mulf %34, %33 : vector<1x8xf32>
    %36 = arith.addf %31, %35 : vector<1x8xf32>
    %c3 = arith.constant 3 : index
    %37 = memref.load %arg1[%c3] : memref<4xf32, #tpu.memory_space<smem>>
    %38 = arith.mulf %20, %19 : vector<1x8xf32>
    %39 = vector.broadcast %37 : f32 to vector<1x8xf32>
    %40 = arith.mulf %39, %38 : vector<1x8xf32>
    %41 = arith.addf %36, %40 : vector<1x8xf32>
    %cst_13 = arith.constant dense<0.000000e+00> : vector<1xf32>
    %42 = vector.multi_reduction <add>, %41, %cst_13 [1] : vector<1x8xf32> to vector<1xf32>
    %43 = vector.shape_cast %42 : vector<1xf32> to vector<1x1xf32>
    %cst_14 = arith.constant 1.000000e+00 : f32
    %44 = vector.broadcast %cst_14 : f32 to vector<1x1xf32>
    %45 = arith.subf %44, %43 : vector<1x1xf32>
    %c0_15 = arith.constant 0 : index
    %c0_16 = arith.constant 0 : index
    %c0_17 = arith.constant 0 : index
    %46 = vector.load %arg4[%c0_15, %c0_16, %c0_17] : memref<1x1x1xf32, #tpu.memory_space<vmem>>, vector<1x1x1xf32>
    %47 = vector.shape_cast %46 : vector<1x1x1xf32> to vector<1x1xf32>
    %48 = vector.shape_cast %45 : vector<1x1xf32> to vector<1x1x1xf32>
    tpu.vector_store %arg4[%c0_15, %c0_16, %c0_17], %48 {strides = array<i32>} : memref<1x1x1xf32, #tpu.memory_space<vmem>>, vector<1x1x1xf32>,
    return
  }
  func.func @transform_0(%arg0: i32) -> i32 {
    %c0_i32 = arith.constant 0 : i32
    %c0_i32_0 = arith.constant 0 : i32
    return %c0_i32 : i32
  }
  func.func @transform_1(%arg0: i32) -> (i32, i32, i32) {
    %c0_i32 = arith.constant 0 : i32
    %c0_i32_0 = arith.constant 0 : i32
    %c0_i32_1 = arith.constant 0 : i32
    return %arg0, %c0_i32, %c0_i32_0 : i32, i32, i32
  }
  func.func @transform_2(%arg0: i32) -> (i32, i32, i32) {
    %c0_i32 = arith.constant 0 : i32
    %c0_i32_0 = arith.constant 0 : i32
    %c0_i32_1 = arith.constant 0 : i32
    return %arg0, %c0_i32, %c0_i32_0 : i32, i32, i32
  }
  func.func @transform_3(%arg0: i32) -> (i32, i32, i32) {
    %c0_i32 = arith.constant 0 : i32
    %c0_i32_0 = arith.constant 0 : i32
    %c0_i32_1 = arith.constant 0 : i32
    return %arg0, %c0_i32, %c0_i32_0 : i32, i32, i32
  }
}

</mosaic_0001>

<llo_original>
// kernel: tpu_custom_call.1
$region0: #{tpu_custom_call.1}
  #allocation0 [shape = 'u32[]', space=smem, size = 0x4, offset = 0x4, fixed_abs, tag = 'smem constant byte address 0x4 - core index']
  #allocation1 [shape = 'u32[144,128]{1,0:T(1,128)}', space=vmem, size = 0x12000, scoped, tag = 'internal scratch']
  %s0 = inlined_call_operand.hbm [shape: f32[4], index: 0, kind: input, shape index: {}]
  %s1 = inlined_call_operand.hbm [shape: f32[4,2,32], index: 1, kind: input, shape index: {}]
  %s2 = inlined_call_operand.hbm [shape: f32[4,8,32], index: 2, kind: input, shape index: {}]
  %s3 = inlined_call_operand.vmem [shape: f32[4,1,1], index: 3, kind: output, shape index: {}]
  %s4 = sld [smem:[#allocation0]]
  $region57: #{tpu_custom_call.1} parent=0
    _
  %s6 = ssub.s32 1, %s4
  %s7 = scalar_select 0, %s6, %s4
  $region1: #{tpu_custom_call.1} parent=0
    #allocation2 [shape = 'u8[512]{0}', space=smem, size = 0x200, scoped, tag = 'input window, operand 0, single buffered']
    #allocation3 [shape = 's32[2]{0}', space=sflag, size = 0x8, scoped, tag = 'scoped memory for tpu_custom_call.1']
    #allocation4 [shape = 's32[2]{0}', space=sflag, size = 0x8, scoped, tag = 'scoped memory for tpu_custom_call.1']
    #allocation5 [shape = 'u8[2048]{0}', space=vmem, size = 0x800, scoped, tag = 'input window, operand 1']
    #allocation6 [shape = 'u8[8192]{0}', space=vmem, size = 0x2000, scoped, tag = 'input window, operand 2']
    #allocation7 [shape = 's32[2]{0}', space=sflag, size = 0x8, scoped, tag = 'scoped memory for tpu_custom_call.1']
    %8 = vsyncpa [#allocation4], 0
    %9 = vsyncpa [#allocation3], 0
    %s10 = scalar_lea.sflag [#allocation3], 1
    %11 = vsyncpa %s10, 0
    %12 = vsyncpa [#allocation7], 0
    %s13 = scalar_lea.sflag [#allocation7], 1
    %14 = vsyncpa %s13, 0
    loop: start=0, step=1, limit=6
    $region2: #{tpu_custom_call.1} parent=1 // loop_pre_header
      _
    $region3: #{tpu_custom_call.1} parent=1 // loop_header
      %s16 = sphi 0, %s20
      %p17 = scmp.ge.s32.totalorder %s16, 6
      %s24 = sphi 0, %s24
      %s26 = sphi 0, %s24
      %s27 = sphi 0, %s26
      %s41 = sphi 0, %s27
      %s47 = sphi 0, %s49
      %s50 = sphi 0, %s47
      %s51 = sphi 0, %s50
      %s67 = sphi 0, %s51
      %s73 = sphi 0, %s75
      %s76 = sphi 0, %s73
      %s77 = sphi 0, %s76
      %s93 = sphi 0, %s77
      %s99 = sphi 0, %s101
      %s102 = sphi 0, %s99
      %s103 = sphi 0, %s102
      %s119 = sphi 0, %s103
    $region4: #{tpu_custom_call.1} parent=1 // loop_header_branch
      %19 = sbr.rel (%p17) target = $region8
    $region5: #{tpu_custom_call.1} parent=1 // loop_body
      %s21 = ssub.s32 %s16, 1
      %s22 = ssub.s32 %s16, 2
      %s23 = sadd.s32 %s16, 1
      %s25 = sadd.s32 %s24, 1
      %p28 = scmp.eq.s32.totalorder %s16, 3
      %p29 = scmp.ne.s32.totalorder %s24, %s26
      %p30 = scmp.eq.s32.totalorder %s16, 0
      %p31 = por %p29, %p30
      %p32 = scmp.ne.s32.totalorder %s24, %s26
      %p33 = scmp.eq.s32.totalorder %s21, 3
      %p34 = por %p32, %p33
      %p35 = scmp.ne.s32.totalorder %s26, %s27
      %p36 = scmp.eq.s32.totalorder %s21, 0
      %p37 = por %p35, %p36
      %p38 = scmp.ne.s32.totalorder %s26, %s27
      %p39 = scmp.eq.s32.totalorder %s22, 3
      %p40 = por %p38, %p39
      %p42 = scmp.ne.s32.totalorder %s27, %s41
      %p43 = scmp.eq.s32.totalorder %s22, 0
      %p44 = por %p42, %p43
      %s45 = ssub.s32 %s16, %s23
      %p46 = scmp.eq.s32.totalorder %s45, 0
      %s48 = sadd.s32 %s47, 1
      %s49 = scalar_select %p46, %s47, %s48
      %p52 = pneg %p46
      %p53 = scmp.eq.s32.totalorder %s16, 3
      %p54 = por %p52, %p53
      %p55 = scmp.ne.s32.totalorder %s47, %s50
      %p56 = scmp.eq.s32.totalorder %s16, 0
      %p57 = por %p55, %p56
      %p58 = scmp.ne.s32.totalorder %s47, %s50
      %p59 = scmp.eq.s32.totalorder %s21, 3
      %p60 = por %p58, %p59
      %p61 = scmp.ne.s32.totalorder %s50, %s51
      %p62 = scmp.eq.s32.totalorder %s21, 0
      %p63 = por %p61, %p62
      %p64 = scmp.ne.s32.totalorder %s50, %s51
      %p65 = scmp.eq.s32.totalorder %s22, 3
      %p66 = por %p64, %p65
      %p68 = scmp.ne.s32.totalorder %s51, %s67
      %p69 = scmp.eq.s32.totalorder %s22, 0
      %p70 = por %p68, %p69
      %s71 = ssub.s32 %s16, %s23
      %p72 = scmp.eq.s32.totalorder %s71, 0
      %s74 = sadd.s32 %s73, 1
      %s75 = scalar_select %p72, %s73, %s74
      %p78 = pneg %p72
      %p79 = scmp.eq.s32.totalorder %s16, 3
      %p80 = por %p78, %p79
      %p81 = scmp.ne.s32.totalorder %s73, %s76
      %p82 = scmp.eq.s32.totalorder %s16, 0
      %p83 = por %p81, %p82
      %p84 = scmp.ne.s32.totalorder %s73, %s76
      %p85 = scmp.eq.s32.totalorder %s21, 3
      %p86 = por %p84, %p85
      %p87 = scmp.ne.s32.totalorder %s76, %s77
      %p88 = scmp.eq.s32.totalorder %s21, 0
      %p89 = por %p87, %p88
      %p90 = scmp.ne.s32.totalorder %s76, %s77
      %p91 = scmp.eq.s32.totalorder %s22, 3
      %p92 = por %p90, %p91
      %p94 = scmp.ne.s32.totalorder %s77, %s93
      %p95 = scmp.eq.s32.totalorder %s22, 0
      %p96 = por %p94, %p95
      %s97 = ssub.s32 %s16, %s23
      %p98 = scmp.eq.s32.totalorder %s97, 0
      %s100 = sadd.s32 %s99, 1
      %s101 = scalar_select %p98, %s99, %s100
      %p104 = pneg %p98
      %p105 = scmp.eq.s32.totalorder %s16, 3
      %p106 = por %p104, %p105
      %p107 = scmp.ne.s32.totalorder %s99, %s102
      %p108 = scmp.eq.s32.totalorder %s16, 0
      %p109 = por %p107, %p108
      %p110 = scmp.ne.s32.totalorder %s99, %s102
      %p111 = scmp.eq.s32.totalorder %s21, 3
      %p112 = por %p110, %p111
      %p113 = scmp.ne.s32.totalorder %s102, %s103
      %p114 = scmp.eq.s32.totalorder %s21, 0
      %p115 = por %p113, %p114
      %p116 = scmp.ne.s32.totalorder %s102, %s103
      %p117 = scmp.eq.s32.totalorder %s22, 3
      %p118 = por %p116, %p117
      %p120 = scmp.ne.s32.totalorder %s103, %s119
      %p121 = scmp.eq.s32.totalorder %s22, 0
      %p122 = por %p120, %p121
      %p123 = scmp.le.s32.totalorder 1, %s16
      %p124 = scmp.lt.s32.totalorder %s16, 5
      %p125 = pnand %p123, %p124
      %p126 = pneg %p125
      // Predicated region
      $region9: #{tpu_custom_call.1} parent=5 // pred_check
        _
      $region10: #{tpu_custom_call.1} parent=5 // pred_check_branch
        %128 = sbr.rel (%p125) target = $region12
      $region11: #{tpu_custom_call.1} parent=5 // pred_region
        %s129 = ssub.s32 %s16, 1
        // Predicated region
        $region13: #{tpu_custom_call.1} parent=11 // pred_check
          %p130 = pneg %p37
        $region14: #{tpu_custom_call.1} parent=11 // pred_check_branch
          %132 = sbr.rel (%p130) target = $region16
        $region15: #{tpu_custom_call.1} parent=11 // pred_region
          %s134 = ssub.s32 16, 16
          %135 = vsyncadd [#allocation4], %s134
          %138 = dma.hbm_to_smem %s0, 16, [#allocation2], [#allocation4]
        $region16: #{tpu_custom_call.1} parent=11 // pred_fallthru
          _
      $region12: #{tpu_custom_call.1} parent=5 // pred_fallthru
        _
      %p139 = scmp.lt.s32.totalorder %s16, 4
      // Predicated region
      $region17: #{tpu_custom_call.1} parent=5 // pred_check
        %p140 = pneg %p139
      $region18: #{tpu_custom_call.1} parent=5 // pred_check_branch
        %142 = sbr.rel (%p140) target = $region20
      $region19: #{tpu_custom_call.1} parent=5 // pred_region
        // Predicated region
        $region21: #{tpu_custom_call.1} parent=19 // pred_check
          %p143 = pneg %p57
        $region22: #{tpu_custom_call.1} parent=19 // pred_check_branch
          %145 = sbr.rel (%p143) target = $region24
        $region23: #{tpu_custom_call.1} parent=19 // pred_region
          %s146 = sand.u32 %s47, 1
          %s147 = scalar_lea.sflag [#allocation3], %s146
          %s148 = sand.u32 %s47, 1
          %s149 = smul.addr %s148, 2
          %s150 = scalar_lea.vmem [#allocation5], %s149
          %s152 = ssub.s32 32, 32
          %153 = vsyncadd %s147, %s152
          %s154 = smul.addr %s16, 32
          %s155 = scalar_lea.hbm %s1, %s154
          %s157 = sshll.u32 %s150, 4
          %s158 = int_to_ptr.vmem [resolvable:$true] %s157
          %160 = dma.hbm_to_vmem [thread:$0]  %s155, 32, %s158, %s147
        $region24: #{tpu_custom_call.1} parent=19 // pred_fallthru
          _
        // Predicated region
        $region25: #{tpu_custom_call.1} parent=19 // pred_check
          %p161 = pneg %p83
        $region26: #{tpu_custom_call.1} parent=19 // pred_check_branch
          %163 = sbr.rel (%p161) target = $region28
        $region27: #{tpu_custom_call.1} parent=19 // pred_region
          %s164 = sand.u32 %s73, 1
          %s165 = scalar_lea.sflag [#allocation7], %s164
          %s166 = sand.u32 %s73, 1
          %s167 = smul.addr %s166, 8
          %s168 = scalar_lea.vmem [#allocation6], %s167
          %s170 = ssub.s32 128, 128
          %171 = vsyncadd %s165, %s170
          %s172 = smul.addr %s16, 128
          %s173 = scalar_lea.hbm %s2, %s172
          %s175 = sshll.u32 %s168, 4
          %s176 = int_to_ptr.vmem [resolvable:$true] %s175
          %178 = dma.hbm_to_vmem [thread:$0]  %s173, 128, %s176, %s165
        $region28: #{tpu_custom_call.1} parent=19 // pred_fallthru
          _
      $region20: #{tpu_custom_call.1} parent=5 // pred_fallthru
        _
      %p179 = scmp.le.s32.totalorder 1, %s16
      %p180 = scmp.lt.s32.totalorder %s16, 5
      %p181 = pnand %p179, %p180
      %p182 = pneg %p181
      // Predicated region
      $region29: #{tpu_custom_call.1} parent=5 // pred_check
        _
      $region30: #{tpu_custom_call.1} parent=5 // pred_check_branch
        %184 = sbr.rel (%p181) target = $region32
      $region31: #{tpu_custom_call.1} parent=5 // pred_region
        %s185 = ssub.s32 %s16, 1
        // Predicated region
        $region33: #{tpu_custom_call.1} parent=31 // pred_check
          %p186 = pneg %p37
        $region34: #{tpu_custom_call.1} parent=31 // pred_check_branch
          %188 = sbr.rel (%p186) target = $region36
        $region35: #{tpu_custom_call.1} parent=31 // pred_region
          %189 = dma.done [#allocation4], 16
        $region36: #{tpu_custom_call.1} parent=31 // pred_fallthru
          _
        %s190 = sand.u32 %s50, 1
        %s191 = scalar_lea.sflag [#allocation3], %s190
        %s192 = sand.u32 %s50, 1
        %s193 = smul.addr %s192, 2
        %s194 = scalar_lea.vmem [#allocation5], %s193
        // Predicated region
        $region37: #{tpu_custom_call.1} parent=31 // pred_check
          %p195 = pneg %p63
        $region38: #{tpu_custom_call.1} parent=31 // pred_check_branch
          %197 = sbr.rel (%p195) target = $region40
        $region39: #{tpu_custom_call.1} parent=31 // pred_region
          %198 = dma.done %s191, 32
        $region40: #{tpu_custom_call.1} parent=31 // pred_fallthru
          _
        %s199 = sand.u32 %s76, 1
        %s200 = scalar_lea.sflag [#allocation7], %s199
        %s201 = sand.u32 %s76, 1
        %s202 = smul.addr %s201, 8
        %s203 = scalar_lea.vmem [#allocation6], %s202
        // Predicated region
        $region41: #{tpu_custom_call.1} parent=31 // pred_check
          %p204 = pneg %p89
        $region42: #{tpu_custom_call.1} parent=31 // pred_check_branch
          %206 = sbr.rel (%p204) target = $region44
        $region43: #{tpu_custom_call.1} parent=31 // pred_region
          %207 = dma.done %s200, 128
        $region44: #{tpu_custom_call.1} parent=31 // pred_fallthru
          _
        %208 = sfence
        %p209 = pneg %p37
        %p210 = pneg %p34
        %s211 = sand.u32 %s50, 1
        %s212 = scalar_lea.sflag [#allocation3], %s211
        %s213 = sand.u32 %s50, 1
        %s214 = smul.addr %s213, 2
        %s215 = scalar_lea.vmem [#allocation5], %s214
        %p216 = pneg %p63
        %p217 = pneg %p60
        %s218 = sand.u32 %s76, 1
        %s219 = scalar_lea.sflag [#allocation7], %s218
        %s220 = sand.u32 %s76, 1
        %s221 = smul.addr %s220, 8
        %s222 = scalar_lea.vmem [#allocation6], %s221
        %p223 = pneg %p89
        %p224 = pneg %p86
        %p225 = pneg %p115
        %p226 = pneg %p112
        %p227 = scmp.lt.s32.totalorder %s21, 3
        %s228 = scalar_select %p227, %s21, 3
        %s229 = scalar_lea.vmem %s3, %s228
        %p230 = scmp.lt.s32.totalorder %s21, 3
        %s231 = scalar_select %p230, %s21, 3
        %s232 = scalar_lea.vmem %s3, %s231
        %v233 = vld [vmem:[%s203] sm:$0xff]
        %v234 = vld [vmem:[%s194] sm:$0x3]
        %v235 = vlaneseq
        %v236 = vshrl.u32 %v235, 7
        %v237 = vsub.s32 0, %v236
        %v238 = vrot.slane %v234, %v237
        %v239 = vmul.f32 %v233, %v238
        %vm240 = vcmask 261120
        %v242 = vsel %vm240, %v239, 0
        %v245 = vsel %vm240, %v233, 0
        %247 = vmatprep.subr.mxu0 0.0
        %248 = vmatpush1.xpose.msra.mxu0 0.0
        %249 = vmatprep.subr.mxu0 0.0
        %250 = vmatpush1.xpose.msra.mxu0 0.0
        %251 = vmatprep.subr.mxu0 0.0
        %252 = vmatpush1.xpose.msra.mxu0 0.0
        %253 = vmatprep.subr.mxu0 0.0
        %254 = vmatpush1.xpose.msra.mxu0 0.0
        %255 = vmatprep.subr.mxu0 0.0
        %256 = vmatpush1.xpose.msra.mxu0 0.0
        %257 = vmatprep.subr.mxu0 0.0
        %258 = vmatpush1.xpose.msra.mxu0 0.0
        %259 = vmatprep.subr.mxu0 0.0
        %260 = vmatpush1.xpose.msra.mxu0 0.0
        %261 = vmatprep.subr.mxu0 0.0
        %262 = vmatpush1.xpose.msra.mxu0 0.0
        %263 = vmatprep.subr.mxu0 0.0
        %264 = vmatpush1.xpose.msra.mxu0 0.0
        %265 = vmatprep.subr.mxu0 0.0
        %266 = vmatpush1.xpose.msra.mxu0 0.0
        %267 = vmatprep.subr.mxu0 0.0
        %268 = vmatpush1.xpose.msra.mxu0 0.0
        %269 = vmatprep.subr.mxu0 0.0
        %270 = vmatpush1.xpose.msra.mxu0 0.0
        %271 = vmatprep.subr.mxu0 0.0
        %272 = vmatpush1.xpose.msra.mxu0 0.0
        %273 = vmatprep.subr.mxu0 0.0
        %274 = vmatpush1.xpose.msra.mxu0 0.0
        %275 = vmatprep.subr.mxu0 0.0
        %276 = vmatpush1.xpose.msra.mxu0 0.0
        %277 = vmatprep.subr.mxu0 0.0
        %278 = vmatpush1.xpose.msra.mxu0 %v245
        %279 = vmatprep.subr.mxu0 0.0
        %280 = vmatpush2.xpose.msra.mxu0 0.0
        %281 = vmatprep.subr.mxu0 0.0
        %282 = vmatpush2.xpose.msra.mxu0 0.0
        %283 = vmatprep.subr.mxu0 0.0
        %284 = vmatpush2.xpose.msra.mxu0 0.0
        %285 = vmatprep.subr.mxu0 0.0
        %286 = vmatpush2.xpose.msra.mxu0 0.0
        %287 = vmatprep.subr.mxu0 0.0
        %288 = vmatpush2.xpose.msra.mxu0 0.0
        %289 = vmatprep.subr.mxu0 0.0
        %290 = vmatpush2.xpose.msra.mxu0 0.0
        %291 = vmatprep.subr.mxu0 0.0
        %292 = vmatpush2.xpose.msra.mxu0 0.0
        %293 = vmatprep.subr.mxu0 0.0
        %294 = vmatpush2.xpose.msra.mxu0 0.0
        %295 = vmatprep.subr.mxu0 0.0
        %296 = vmatpush2.xpose.msra.mxu0 0.0
        %297 = vmatprep.subr.mxu0 0.0
        %298 = vmatpush2.xpose.msra.mxu0 0.0
        %299 = vmatprep.subr.mxu0 0.0
        %300 = vmatpush2.xpose.msra.mxu0 0.0
        %301 = vmatprep.subr.mxu0 0.0
        %302 = vmatpush2.xpose.msra.mxu0 0.0
        %303 = vmatprep.subr.mxu0 0.0
        %304 = vmatpush2.xpose.msra.mxu0 0.0
        %305 = vmatprep.subr.mxu0 0.0
        %306 = vmatpush2.xpose.msra.mxu0 0.0
        %307 = vmatprep.subr.mxu0 0.0
        %308 = vmatpush2.xpose.msra.mxu0 0.0
        %309 = vmatprep.subr.mxu0 0.0
        %310 = vmatpush2.xpose.msra.mxu0 0.0
        %311 = vmatprep.mubr.f32.mxu0 0.0
        %312 = vmatmul.mubr.f32.gmra.mxu0 %v242
        %v313 = vpop.f32.mrf.mxu0
        %v314 = vadd.f32 0.0, %v313
        %v315 = vpop.f32.mrf.mxu0
        %316 = vdwg.mxu0
        %v317 = vlaneseq
        %v318 = vshrl.u32 %v317, 7
        %v319 = vlaneseq
        %v320 = vand.u32 %v319, 127
        %vm321 = vcmp.lt.s32.totalorder %v320, %v318
        %v322 = vsel %vm321, %v314, 0.0
        %vm323 = vcmp.gt.s32.totalorder %v320, %v318
        %v324 = vsel %vm323, %v314, 0.0
        %v326 = vrot.slane %v234, 1
        %vm327 = vcmask 64512
        %v328 = vsel %vm327, %v326, 0
        %330 = vmatprep.subr.mxu0 0.0
        %331 = vmatpush1.msra.mxu0 0.0
        %332 = vmatprep.subr.mxu0 0.0
        %333 = vmatpush1.msra.mxu0 0.0
        %334 = vmatprep.subr.mxu0 0.0
        %335 = vmatpush1.msra.mxu0 0.0
        %336 = vmatprep.subr.mxu0 0.0
        %337 = vmatpush1.msra.mxu0 0.0
        %338 = vmatprep.subr.mxu0 0.0
        %339 = vmatpush1.msra.mxu0 0.0
        %340 = vmatprep.subr.mxu0 0.0
        %341 = vmatpush1.msra.mxu0 0.0
        %342 = vmatprep.subr.mxu0 0.0
        %343 = vmatpush1.msra.mxu0 0.0
        %344 = vmatprep.subr.mxu0 0.0
        %345 = vmatpush1.msra.mxu0 0.0
        %346 = vmatprep.subr.mxu0 0.0
        %347 = vmatpush1.msra.mxu0 0.0
        %348 = vmatprep.subr.mxu0 0.0
        %349 = vmatpush1.msra.mxu0 0.0
        %350 = vmatprep.subr.mxu0 0.0
        %351 = vmatpush1.msra.mxu0 0.0
        %352 = vmatprep.subr.mxu0 0.0
        %353 = vmatpush1.msra.mxu0 0.0
        %354 = vmatprep.subr.mxu0 0.0
        %355 = vmatpush1.msra.mxu0 0.0
        %356 = vmatprep.subr.mxu0 0.0
        %357 = vmatpush1.msra.mxu0 0.0
        %358 = vmatprep.subr.mxu0 0.0
        %359 = vmatpush1.msra.mxu0 0.0
        %360 = vmatprep.subr.mxu0 0.0
        %361 = vmatpush1.msra.mxu0 %v322
        %362 = vmatprep.subr.mxu0 0.0
        %363 = vmatpush2.msra.mxu0 0.0
        %364 = vmatprep.subr.mxu0 0.0
        %365 = vmatpush2.msra.mxu0 0.0
        %366 = vmatprep.subr.mxu0 0.0
        %367 = vmatpush2.msra.mxu0 0.0
        %368 = vmatprep.subr.mxu0 0.0
        %369 = vmatpush2.msra.mxu0 0.0
        %370 = vmatprep.subr.mxu0 0.0
        %371 = vmatpush2.msra.mxu0 0.0
        %372 = vmatprep.subr.mxu0 0.0
        %373 = vmatpush2.msra.mxu0 0.0
        %374 = vmatprep.subr.mxu0 0.0
        %375 = vmatpush2.msra.mxu0 0.0
        %376 = vmatprep.subr.mxu0 0.0
        %377 = vmatpush2.msra.mxu0 0.0
        %378 = vmatprep.subr.mxu0 0.0
        %379 = vmatpush2.msra.mxu0 0.0
        %380 = vmatprep.subr.mxu0 0.0
        %381 = vmatpush2.msra.mxu0 0.0
        %382 = vmatprep.subr.mxu0 0.0
        %383 = vmatpush2.msra.mxu0 0.0
        %384 = vmatprep.subr.mxu0 0.0
        %385 = vmatpush2.msra.mxu0 0.0
        %386 = vmatprep.subr.mxu0 0.0
        %387 = vmatpush2.msra.mxu0 0.0
        %388 = vmatprep.subr.mxu0 0.0
        %389 = vmatpush2.msra.mxu0 0.0
        %390 = vmatprep.subr.mxu0 0.0
        %391 = vmatpush2.msra.mxu0 0.0
        %392 = vmatprep.subr.mxu0 0.0
        %393 = vmatpush2.msra.mxu0 0.0
        %394 = vmatprep.mubr.f32.mxu0 0.0
        %395 = vmatmul.mubr.f32.gmra.mxu0 %v328
        %v396 = vpop.f32.mrf.mxu0
        %v397 = vadd.f32 0.0, %v396
        %v398 = vpop.f32.mrf.mxu0
        %399 = vdwg.mxu0
        %400 = vmatprep.subr.mxu0 0.0
        %401 = vmatpush1.msra.mxu0 0.0
        %402 = vmatprep.subr.mxu0 0.0
        %403 = vmatpush1.msra.mxu0 0.0
        %404 = vmatprep.subr.mxu0 0.0
        %405 = vmatpush1.msra.mxu0 0.0
        %406 = vmatprep.subr.mxu0 0.0
        %407 = vmatpush1.msra.mxu0 0.0
        %408 = vmatprep.subr.mxu0 0.0
        %409 = vmatpush1.msra.mxu0 0.0
        %410 = vmatprep.subr.mxu0 0.0
        %411 = vmatpush1.msra.mxu0 0.0
        %412 = vmatprep.subr.mxu0 0.0
        %413 = vmatpush1.msra.mxu0 0.0
        %414 = vmatprep.subr.mxu0 0.0
        %415 = vmatpush1.msra.mxu0 0.0
        %416 = vmatprep.subr.mxu0 0.0
        %417 = vmatpush1.msra.mxu0 0.0
        %418 = vmatprep.subr.mxu0 0.0
        %419 = vmatpush1.msra.mxu0 0.0
        %420 = vmatprep.subr.mxu0 0.0
        %421 = vmatpush1.msra.mxu0 0.0
        %422 = vmatprep.subr.mxu0 0.0
        %423 = vmatpush1.msra.mxu0 0.0
        %424 = vmatprep.subr.mxu0 0.0
        %425 = vmatpush1.msra.mxu0 0.0
        %426 = vmatprep.subr.mxu0 0.0
        %427 = vmatpush1.msra.mxu0 0.0
        %428 = vmatprep.subr.mxu0 0.0
        %429 = vmatpush1.msra.mxu0 0.0
        %430 = vmatprep.subr.mxu0 0.0
        %431 = vmatpush1.msra.mxu0 %v324
        %432 = vmatprep.subr.mxu0 0.0
        %433 = vmatpush2.msra.mxu0 0.0
        %434 = vmatprep.subr.mxu0 0.0
        %435 = vmatpush2.msra.mxu0 0.0
        %436 = vmatprep.subr.mxu0 0.0
        %437 = vmatpush2.msra.mxu0 0.0
        %438 = vmatprep.subr.mxu0 0.0
        %439 = vmatpush2.msra.mxu0 0.0
        %440 = vmatprep.subr.mxu0 0.0
        %441 = vmatpush2.msra.mxu0 0.0
        %442 = vmatprep.subr.mxu0 0.0
        %443 = vmatpush2.msra.mxu0 0.0
        %444 = vmatprep.subr.mxu0 0.0
        %445 = vmatpush2.msra.mxu0 0.0
        %446 = vmatprep.subr.mxu0 0.0
        %447 = vmatpush2.msra.mxu0 0.0
        %448 = vmatprep.subr.mxu0 0.0
        %449 = vmatpush2.msra.mxu0 0.0
        %450 = vmatprep.subr.mxu0 0.0
        %451 = vmatpush2.msra.mxu0 0.0
        %452 = vmatprep.subr.mxu0 0.0
        %453 = vmatpush2.msra.mxu0 0.0
        %454 = vmatprep.subr.mxu0 0.0
        %455 = vmatpush2.msra.mxu0 0.0
        %456 = vmatprep.subr.mxu0 0.0
        %457 = vmatpush2.msra.mxu0 0.0
        %458 = vmatprep.subr.mxu0 0.0
        %459 = vmatpush2.msra.mxu0 0.0
        %460 = vmatprep.subr.mxu0 0.0
        %461 = vmatpush2.msra.mxu0 0.0
        %462 = vmatprep.subr.mxu0 0.0
        %463 = vmatpush2.msra.mxu0 0.0
        %464 = vmatprep.mubr.f32.mxu0 0.0
        %465 = vmatmul.mubr.f32.gmra.mxu0 %v328
        %v466 = vpop.f32.mrf.mxu0
        %v467 = vadd.f32 0.0, %v466
        %v468 = vpop.f32.mrf.mxu0
        %469 = vdwg.mxu0
        %v471 = vsel %vm327, %v397, 0
        %473 = vmatprep.subr.mxu0 0.0
        %474 = vmatpush1.msra.mxu0 0.0
        %475 = vmatprep.subr.mxu0 0.0
        %476 = vmatpush1.msra.mxu0 0.0
        %477 = vmatprep.subr.mxu0 0.0
        %478 = vmatpush1.msra.mxu0 0.0
        %479 = vmatprep.subr.mxu0 0.0
        %480 = vmatpush1.msra.mxu0 0.0
        %481 = vmatprep.subr.mxu0 0.0
        %482 = vmatpush1.msra.mxu0 0.0
        %483 = vmatprep.subr.mxu0 0.0
        %484 = vmatpush1.msra.mxu0 0.0
        %485 = vmatprep.subr.mxu0 0.0
        %486 = vmatpush1.msra.mxu0 0.0
        %487 = vmatprep.subr.mxu0 0.0
        %488 = vmatpush1.msra.mxu0 0.0
        %489 = vmatprep.subr.mxu0 0.0
        %490 = vmatpush1.msra.mxu0 0.0
        %491 = vmatprep.subr.mxu0 0.0
        %492 = vmatpush1.msra.mxu0 0.0
        %493 = vmatprep.subr.mxu0 0.0
        %494 = vmatpush1.msra.mxu0 0.0
        %495 = vmatprep.subr.mxu0 0.0
        %496 = vmatpush1.msra.mxu0 0.0
        %497 = vmatprep.subr.mxu0 0.0
        %498 = vmatpush1.msra.mxu0 0.0
        %499 = vmatprep.subr.mxu0 0.0
        %500 = vmatpush1.msra.mxu0 0.0
        %501 = vmatprep.subr.mxu0 0.0
        %502 = vmatpush1.msra.mxu0 0.0
        %503 = vmatprep.subr.mxu0 0.0
        %504 = vmatpush1.msra.mxu0 %v322
        %505 = vmatprep.subr.mxu0 0.0
        %506 = vmatpush2.msra.mxu0 0.0
        %507 = vmatprep.subr.mxu0 0.0
        %508 = vmatpush2.msra.mxu0 0.0
        %509 = vmatprep.subr.mxu0 0.0
        %510 = vmatpush2.msra.mxu0 0.0
        %511 = vmatprep.subr.mxu0 0.0
        %512 = vmatpush2.msra.mxu0 0.0
        %513 = vmatprep.subr.mxu0 0.0
        %514 = vmatpush2.msra.mxu0 0.0
        %515 = vmatprep.subr.mxu0 0.0
        %516 = vmatpush2.msra.mxu0 0.0
        %517 = vmatprep.subr.mxu0 0.0
        %518 = vmatpush2.msra.mxu0 0.0
        %519 = vmatprep.subr.mxu0 0.0
        %520 = vmatpush2.msra.mxu0 0.0
        %521 = vmatprep.subr.mxu0 0.0
        %522 = vmatpush2.msra.mxu0 0.0
        %523 = vmatprep.subr.mxu0 0.0
        %524 = vmatpush2.msra.mxu0 0.0
        %525 = vmatprep.subr.mxu0 0.0
        %526 = vmatpush2.msra.mxu0 0.0
        %527 = vmatprep.subr.mxu0 0.0
        %528 = vmatpush2.msra.mxu0 0.0
        %529 = vmatprep.subr.mxu0 0.0
        %530 = vmatpush2.msra.mxu0 0.0
        %531 = vmatprep.subr.mxu0 0.0
        %532 = vmatpush2.msra.mxu0 0.0
        %533 = vmatprep.subr.mxu0 0.0
        %534 = vmatpush2.msra.mxu0 0.0
        %535 = vmatprep.subr.mxu0 0.0
        %536 = vmatpush2.msra.mxu0 0.0
        %537 = vmatprep.mubr.f32.mxu0 0.0
        %538 = vmatmul.mubr.f32.gmra.mxu0 %v471
        %v539 = vpop.f32.mrf.mxu0
        %v540 = vadd.f32 0.0, %v539
        %v541 = vpop.f32.mrf.mxu0
        %542 = vdwg.mxu0
        %v544 = vsel %vm327, %v467, 0
        %546 = vmatprep.subr.mxu0 0.0
        %547 = vmatpush1.msra.mxu0 0.0
        %548 = vmatprep.subr.mxu0 0.0
        %549 = vmatpush1.msra.mxu0 0.0
        %550 = vmatprep.subr.mxu0 0.0
        %551 = vmatpush1.msra.mxu0 0.0
        %552 = vmatprep.subr.mxu0 0.0
        %553 = vmatpush1.msra.mxu0 0.0
        %554 = vmatprep.subr.mxu0 0.0
        %555 = vmatpush1.msra.mxu0 0.0
        %556 = vmatprep.subr.mxu0 0.0
        %557 = vmatpush1.msra.mxu0 0.0
        %558 = vmatprep.subr.mxu0 0.0
        %559 = vmatpush1.msra.mxu0 0.0
        %560 = vmatprep.subr.mxu0 0.0
        %561 = vmatpush1.msra.mxu0 0.0
        %562 = vmatprep.subr.mxu0 0.0
        %563 = vmatpush1.msra.mxu0 0.0
        %564 = vmatprep.subr.mxu0 0.0
        %565 = vmatpush1.msra.mxu0 0.0
        %566 = vmatprep.subr.mxu0 0.0
        %567 = vmatpush1.msra.mxu0 0.0
        %568 = vmatprep.subr.mxu0 0.0
        %569 = vmatpush1.msra.mxu0 0.0
        %570 = vmatprep.subr.mxu0 0.0
        %571 = vmatpush1.msra.mxu0 0.0
        %572 = vmatprep.subr.mxu0 0.0
        %573 = vmatpush1.msra.mxu0 0.0
        %574 = vmatprep.subr.mxu0 0.0
        %575 = vmatpush1.msra.mxu0 0.0
        %576 = vmatprep.subr.mxu0 0.0
        %577 = vmatpush1.msra.mxu0 %v324
        %578 = vmatprep.subr.mxu0 0.0
        %579 = vmatpush2.msra.mxu0 0.0
        %580 = vmatprep.subr.mxu0 0.0
        %581 = vmatpush2.msra.mxu0 0.0
        %582 = vmatprep.subr.mxu0 0.0
        %583 = vmatpush2.msra.mxu0 0.0
        %584 = vmatprep.subr.mxu0 0.0
        %585 = vmatpush2.msra.mxu0 0.0
        %586 = vmatprep.subr.mxu0 0.0
        %587 = vmatpush2.msra.mxu0 0.0
        %588 = vmatprep.subr.mxu0 0.0
        %589 = vmatpush2.msra.mxu0 0.0
        %590 = vmatprep.subr.mxu0 0.0
        %591 = vmatpush2.msra.mxu0 0.0
        %592 = vmatprep.subr.mxu0 0.0
        %593 = vmatpush2.msra.mxu0 0.0
        %594 = vmatprep.subr.mxu0 0.0
        %595 = vmatpush2.msra.mxu0 0.0
        %596 = vmatprep.subr.mxu0 0.0
        %597 = vmatpush2.msra.mxu0 0.0
        %598 = vmatprep.subr.mxu0 0.0
        %599 = vmatpush2.msra.mxu0 0.0
        %600 = vmatprep.subr.mxu0 0.0
        %601 = vmatpush2.msra.mxu0 0.0
        %602 = vmatprep.subr.mxu0 0.0
        %603 = vmatpush2.msra.mxu0 0.0
        %604 = vmatprep.subr.mxu0 0.0
        %605 = vmatpush2.msra.mxu0 0.0
        %606 = vmatprep.subr.mxu0 0.0
        %607 = vmatpush2.msra.mxu0 0.0
        %608 = vmatprep.subr.mxu0 0.0
        %609 = vmatpush2.msra.mxu0 0.0
        %610 = vmatprep.mubr.f32.mxu0 0.0
        %611 = vmatmul.mubr.f32.gmra.mxu0 %v544
        %v612 = vpop.f32.mrf.mxu0
        %v613 = vadd.f32 0.0, %v612
        %v614 = vpop.f32.mrf.mxu0
        %615 = vdwg.mxu0
        %s616 = sld [smem:[#allocation2]]
        %v617 = vrot.slane %v397, 7
        %v619 = vmul.f32 %v234, %v617
        %v620 = vstv %s616
        %v621 = vmul.f32 %v620, %v619
        %v622 = vadd.f32 %v621, 0.0
        %s623 = sld [smem:[#allocation2 + $0x1]]
        %v624 = vmul.f32 %v467, %v397
        %v625 = vstv %s623
        %v626 = vmul.f32 %v625, %v624
        %v628 = vrot.slane %v626, 7
        %v630 = vadd.f32 %v622, %v628
        %s631 = sld [smem:[#allocation2 + $0x2]]
        %v632 = vmul.f32 %v467, %v540
        %v633 = vstv %s631
        %v634 = vmul.f32 %v633, %v632
        %v636 = vrot.slane %v634, 7
        %v638 = vadd.f32 %v630, %v636
        %s639 = sld [smem:[#allocation2 + $0x3]]
        %v640 = vmul.f32 %v613, %v540
        %v641 = vstv %s639
        %v642 = vmul.f32 %v641, %v640
        %v644 = vrot.slane %v642, 7
        %v646 = vadd.f32 %v638, %v644
        %vm647 = vcmask 58369
        %v648 = vsel %vm647, %v646, 0.0
        %649 = vadd.xlane.f32.xlu0 %v648
        %v650 = vpop.xlane.xlu0 %649
        %v651 = vsub.f32 1.0, %v650
        %vm652 = vcmask 1025
        %653 = vst.msk [vmem:[%s232 - $0x1] sm:$0x2] %vm652, %v651
        %p654 = scmp.lt.s32.totalorder %s21, 3
        %s655 = scalar_select %p654, %s21, 3
        %s656 = scalar_lea.vmem %s3, %s655
        // Predicated region
        $region45: #{tpu_custom_call.1} parent=31 // pred_check
          %p657 = pneg %p112
        $region46: #{tpu_custom_call.1} parent=31 // pred_check_branch
          %659 = sbr.rel (%p657) target = $region48
        $region47: #{tpu_custom_call.1} parent=31 // pred_region
          _
        $region48: #{tpu_custom_call.1} parent=31 // pred_fallthru
          _
      $region32: #{tpu_custom_call.1} parent=5 // pred_fallthru
        _
      %p660 = scmp.le.s32.totalorder 2, %s16
      // Predicated region
      $region49: #{tpu_custom_call.1} parent=5 // pred_check
        %p661 = pneg %p660
      $region50: #{tpu_custom_call.1} parent=5 // pred_check_branch
        %663 = sbr.rel (%p661) target = $region52
      $region51: #{tpu_custom_call.1} parent=5 // pred_region
        %s664 = ssub.s32 %s16, 2
        // Predicated region
        $region53: #{tpu_custom_call.1} parent=51 // pred_check
          %p665 = pneg %p118
        $region54: #{tpu_custom_call.1} parent=51 // pred_check_branch
          %667 = sbr.rel (%p665) target = $region56
        $region55: #{tpu_custom_call.1} parent=51 // pred_region
          %p668 = scmp.lt.s32.totalorder %s22, 3
          %s669 = scalar_select %p668, %s22, 3
          %s670 = scalar_lea.vmem %s3, %s669
        $region56: #{tpu_custom_call.1} parent=51 // pred_fallthru
          _
      $region52: #{tpu_custom_call.1} parent=5 // pred_fallthru
        _
    $region6: #{tpu_custom_call.1} parent=1 // loop_footer
      %s20 = sadd.s32 1, %s16
    $region7: #{tpu_custom_call.1} parent=1 // loop_footer_branch
      %15 = sbr.rel target = $region3
    $region8: #{tpu_custom_call.1} parent=1 // loop_exit
      _
    %671 = vsyncpa [#allocation3], 1
    %s672 = scalar_lea.sflag [#allocation3], 1
    %673 = vsyncpa %s672, 1
    %674 = vsyncpa [#allocation7], 1
    %s675 = scalar_lea.sflag [#allocation7], 1
    %676 = vsyncpa %s675, 1
    %677 = vsyncpa [#allocation4], 1
    %s678 = scalar_lea.sflag [#allocation4], 1
    %679 = vsyncpa %s678, 1

</llo_original>
